<compile_context>
chip_gen: v7x
topology: tpu7x:2x2x1
jax: 0.10.0
libtpu: 0.0.40
codegen_flags: <defaults>
</compile_context>

<pallas_src>
import jax
import jax.numpy as jnp
from jax.experimental import pallas as pl
from jax.experimental.pallas import tpu as pltpu


def _residual_drop_kernel(keep_ref,            # SMEM (B,) int32  scalar-prefetch
                          mask_ref,            # SMEM (B,) f32    scalar-prefetch
                          x_ref,               # VMEM (1, C, TN)  input dtype
                          w1t_ref, b1_ref,     # VMEM (Hd, C) bf16, (Hd, 1) f32
                          w2t_ref, b2_ref,     # VMEM (C, Hd) bf16, (C, 1) f32
                          o_ref):              # VMEM (1, C, TN)
    b = pl.program_id(0)

    @pl.when(keep_ref[b] == 1)
    def _ffn():
        scale = mask_ref[b]                              # 1/(1-drop) or 1.0 (eval)
        x_in = x_ref[0]                                  # (C, TN), N on lanes
        x_bf = x_in.astype(jnp.bfloat16)                 # no-op if input is bf16

        # m(x): 1x1 conv -> ReLU -> 1x1 conv as channel matmuls, NCHW-native.
        h = jnp.dot(w1t_ref[...], x_bf,
                    preferred_element_type=jnp.float32) + b1_ref[...]   # (Hd, TN)
        h = jnp.maximum(h, 0.0).astype(jnp.bfloat16)
        y = jnp.dot(w2t_ref[...], h,
                    preferred_element_type=jnp.float32) + b2_ref[...]   # (C, TN)

        # x + m(x) * per-sample scale  (f32 epilogue, lane-dense store)
        o_ref[0] = (x_in.astype(jnp.float32) + scale * y).astype(o_ref.dtype)

    @pl.when(keep_ref[b] == 0)
    def _dropped():
        # Stochastic-depth dropped sample: out = x, all MXU/VPU work skipped.
        o_ref[0] = x_ref[0]


def _choose_tn(n128, cap_lanes, want_tiles):
    """Largest 128-multiple divisor of n128 that is <= cap_lanes and leaves at
    least `want_tiles` tiles (when possible)."""
    d_total = n128 // 128
    want = min(want_tiles, d_total)
    best = 1
    for d in range(1, d_total + 1):
        if d_total % d == 0 and 128 * d <= cap_lanes and d_total // d >= want:
            best = d
    return 128 * best


def residual_drop(x_nchw, w1t, b1, w2t, b2, *, drop=0.0, training=False, rng=None):
    """x_nchw: (B, C, H, W).  w1t: (Hd, C), b1: (Hd, 1), w2t: (C, Hd), b2: (C, 1)."""
    B, C, H, W = x_nchw.shape
    Hd = w1t.shape[0]
    N = H * W
    itemsize = jnp.dtype(x_nchw.dtype).itemsize

    # NCHW kept as-is; flattening spatial dims is a free reshape (no transpose).
    # Pad N up to a multiple of 128 so every tile is full and stores unmasked.
    N128 = ((N + 127) // 128) * 128
    x = x_nchw.reshape(B, C, N)
    if N128 != N:
        x = jnp.pad(x, ((0, 0), (0, 0), (0, N128 - N)))

    # Per-sample stochastic-depth mask, matching
    # torch.rand(B,1,1,1).ge_(drop).div_(1 - drop)
    if training and drop > 0.0:
        assert rng is not None
        u = jax.random.uniform(rng, (B,), dtype=jnp.float32)
        keep = (u >= drop).astype(jnp.int32)
        mask = keep.astype(jnp.float32) / (1.0 - drop)
    else:
        keep = jnp.ones((B,), dtype=jnp.int32)
        mask = jnp.ones((B,), dtype=jnp.float32)

    # ---- VMEM-budget-driven spatial tile (TN) ---------------------------------
    # Per-lane working set: double-buffered x + out blocks, bf16 x copy,
    # f32 residual/epilogue copies, f32+bf16 h intermediates.
    per_lane = C * (2 * itemsize + 2 * itemsize + 10) + Hd * 6
    budget = 24 << 20                      # conservative: safe on v7x's 64 MiB
    cap_lanes = max(128, min(8192, (budget // per_lane) // 128 * 128))
    want_tiles = 1 if B >= 2 else 2        # keep >=2 grid steps for v7x's 2 TCs
    TN = _choose_tn(N128, cap_lanes, want_tiles)
    n_tiles = N128 // TN

    # Double-buffered bf16 weights + f32 biases (constant index_maps).
    fixed_bytes = 2 * (2 * C * Hd * 2) + 2 * (C + Hd) * 4
    work_bytes = per_lane * TN + fixed_bytes
    vmem_limit = int(min(48 << 20, max(work_bytes * 5 // 4, 16 << 20)))

    # Weights in HBM as bf16 (native MXU rate, half the weight traffic).
    w1t_bf = w1t.astype(jnp.bfloat16)
    w2t_bf = w2t.astype(jnp.bfloat16)
    b1 = b1.astype(jnp.float32)
    b2 = b2.astype(jnp.float32)

    grid_spec = pltpu.PrefetchScalarGridSpec(
        num_scalar_prefetch=2,                     # keep + mask land in SMEM
        grid=(B, n_tiles),
        in_specs=[
            pl.BlockSpec((1, C, TN), lambda b, n, k, m: (b, 0, n)),   # x
            pl.BlockSpec((Hd, C),    lambda b, n, k, m: (0, 0)),      # w1^T
            pl.BlockSpec((Hd, 1),    lambda b, n, k, m: (0, 0)),      # b1
            pl.BlockSpec((C, Hd),    lambda b, n, k, m: (0, 0)),      # w2^T
            pl.BlockSpec((C, 1),     lambda b, n, k, m: (0, 0)),      # b2
        ],
        out_specs=pl.BlockSpec((1, C, TN), lambda b, n, k, m: (b, 0, n)),
    )

    cost = pl.CostEstimate(
        flops=4 * B * N128 * C * Hd,                 # two matmuls
        transcendentals=0,
        bytes_accessed=2 * B * C * N128 * itemsize   # x in + out
                       + 2 * C * Hd * 2              # bf16 weights
                       + (C + Hd) * 4)               # f32 biases

    out = pl.pallas_call(
        _residual_drop_kernel,
        out_shape=jax.ShapeDtypeStruct((B, C, N128), x_nchw.dtype),
        grid_spec=grid_spec,
        compiler_params=pltpu.CompilerParams(
            dimension_semantics=("parallel", "parallel"),
            vmem_limit_bytes=vmem_limit),
        cost_estimate=cost,
    )(keep, mask, x, w1t_bf, b1, w2t_bf, b2)

    return out[:, :, :N].reshape(B, C, H, W)


def _reference(x_nchw, w1t, b1, w2t, b2):
    """Pure-JAX reference of x + m(x) mimicking the kernel's bf16 operand
    rounding (bf16 matmul inputs, f32 accumulation, f32 residual add)."""
    B, C, H, W = x_nchw.shape
    x = x_nchw.reshape(B, C, H * W).astype(jnp.float32)
    xb = x.astype(jnp.bfloat16).astype(jnp.float32)
    w1b = w1t.astype(jnp.bfloat16).astype(jnp.float32)
    w2b = w2t.astype(jnp.bfloat16).astype(jnp.float32)
    h = jnp.maximum(jnp.einsum("hc,bcn->bhn", w1b, xb) + b1[None], 0.0)
    hb = h.astype(jnp.bfloat16).astype(jnp.float32)
    y = jnp.einsum("ch,bhn->bcn", w2b, hb) + b2[None]
    return (x + y).reshape(B, C, H, W)


if __name__ == "__main__":
    key = jax.random.PRNGKey(0)
    k_x, k_w1, k_b1, k_w2, k_b2, k_drop, k_x2 = jax.random.split(key, 7)

    # Small shapes consistent with the module's NCHW conv input.
    B, C, H, W = 2, 32, 16, 16
    Hd = 64  # hidden channels of the wrapped 1x1-conv FFN

    x = jax.random.normal(k_x, (B, C, H, W), dtype=jnp.float32)

    # Deterministic parameter init: Conv2d weights squeezed to (out, in).
    w1t = jax.random.normal(k_w1, (Hd, C), dtype=jnp.float32) * 0.05
    b1 = jax.random.normal(k_b1, (Hd, 1), dtype=jnp.float32) * 0.01
    w2t = jax.random.normal(k_w2, (C, Hd), dtype=jnp.float32) * 0.05
    b2 = jax.random.normal(k_b2, (C, 1), dtype=jnp.float32) * 0.01

    # ---- eval / drop=0 path:  out = x + m(x) ----
    out_eval = jax.block_until_ready(
        residual_drop(x, w1t, b1, w2t, b2, drop=0.0, training=False))
    ref_eval = _reference(x, w1t, b1, w2t, b2)
    assert out_eval.shape == x.shape
    assert jnp.allclose(out_eval, ref_eval, atol=2e-2, rtol=2e-2)

    # ---- training path:  out = x + m(x) * mask/(1-drop) ----
    drop = 0.3
    out_train = jax.block_until_ready(
        residual_drop(x, w1t, b1, w2t, b2, drop=drop, training=True, rng=k_drop))
    u = jax.random.uniform(k_drop, (B,), dtype=jnp.float32)
    mask = (u >= drop).astype(jnp.float32) / (1.0 - drop)
    ref_train = x + (ref_eval - x) * mask[:, None, None, None]
    assert out_train.shape == x.shape
    assert jnp.allclose(out_train, ref_train, atol=2e-2, rtol=2e-2)

    # ---- non-128-multiple spatial size (N = 14*14 = 196) exercises padding ----
    x2 = jax.random.normal(k_x2, (B, C, 14, 14), dtype=jnp.float32)
    out2 = jax.block_until_ready(
        residual_drop(x2, w1t, b1, w2t, b2, drop=0.0, training=False))
    ref2 = _reference(x2, w1t, b1, w2t, b2)
    assert out2.shape == x2.shape
    assert jnp.allclose(out2, ref2, atol=2e-2, rtol=2e-2)

    print("KERNEL_OK")
</pallas_src>

<mosaic_0001>
module attributes {stable_mosaic.version = 11 : i64} {
  func.func @_residual_drop_kernel(%arg0: i32, %arg1: i32, %arg2: memref<2xi32, #tpu.memory_space<smem>>, %arg3: memref<2xf32, #tpu.memory_space<smem>>, %arg4: memref<1x32x256xf32, #tpu.memory_space<vmem>>, %arg5: memref<64x32xbf16, #tpu.memory_space<vmem>>, %arg6: memref<64x1xf32, #tpu.memory_space<vmem>>, %arg7: memref<32x64xbf16, #tpu.memory_space<vmem>>, %arg8: memref<32x1xf32, #tpu.memory_space<vmem>>, %arg9: memref<1x32x256xf32, #tpu.memory_space<vmem>>) attributes {dimension_semantics = [#tpu.dimension_semantics<parallel>, #tpu.dimension_semantics<parallel>], iteration_bounds = array<i64: 2, 1>, scalar_prefetch = 2 : i64, scratch_operands = 0 : i64, tpu.core_type = #tpu.core_type<tc>, window_params = [{transform_indices = @transform_0, window_bounds = array<i64: 1, 32, 256>}, {pipeline_mode = #tpu.pipeline_mode<synchronous>, transform_indices = @transform_1, window_bounds = array<i64: 64, 32>}, {pipeline_mode = #tpu.pipeline_mode<synchronous>, transform_indices = @transform_2, window_bounds = array<i64: 64, 1>}, {pipeline_mode = #tpu.pipeline_mode<synchronous>, transform_indices = @transform_3, window_bounds = array<i64: 32, 64>}, {pipeline_mode = #tpu.pipeline_mode<synchronous>, transform_indices = @transform_4, window_bounds = array<i64: 32, 1>}, {transform_indices = @transform_5, window_bounds = array<i64: 1, 32, 256>}]} {
    %0 = arith.index_cast %arg0 : i32 to index
    %1 = memref.load %arg2[%0] : memref<2xi32, #tpu.memory_space<smem>>
    %c1_i32 = arith.constant 1 : i32
    %2 = arith.cmpi eq, %1, %c1_i32 : i32
    %3 = arith.extui %2 : i1 to i32
    %c0_i32 = arith.constant 0 : i32
    %4 = arith.cmpi ne, %3, %c0_i32 : i32
    scf.if %4 {
      %10 = arith.index_cast %arg0 : i32 to index
      %11 = memref.load %arg3[%10] : memref<2xf32, #tpu.memory_space<smem>>
      %c0 = arith.constant 0 : index
      %c0_2 = arith.constant 0 : index
      %c0_3 = arith.constant 0 : index
      %12 = vector.load %arg4[%c0, %c0_2, %c0_3] : memref<1x32x256xf32, #tpu.memory_space<vmem>>, vector<1x32x256xf32>
      %13 = vector.shape_cast %12 : vector<1x32x256xf32> to vector<32x256xf32>
      %14 = arith.truncf %13 : vector<32x256xf32> to vector<32x256xbf16>
      %c0_4 = arith.constant 0 : index
      %c0_5 = arith.constant 0 : index
      %15 = vector.load %arg5[%c0_4, %c0_5] : memref<64x32xbf16, #tpu.memory_space<vmem>>, vector<64x32xbf16>
      %cst = arith.constant dense<0.000000e+00> : vector<64x256xf32>
      %16 = tpu.matmul %15, %14, %cst {dimension_numbers = #tpu.dot_dimension_numbers<[1], [0], [0], [1], [0, 0, 1, 1], [], []>} : vector<64x32xbf16>, vector<32x256xbf16>, vector<64x256xf32> -> vector<64x256xf32>
      %c0_6 = arith.constant 0 : index
      %c0_7 = arith.constant 0 : index
      %17 = vector.load %arg6[%c0_6, %c0_7] : memref<64x1xf32, #tpu.memory_space<vmem>>, vector<64x1xf32>
      %18 = vector.broadcast %17 : vector<64x1xf32> to vector<64x256xf32>
      %19 = arith.addf %16, %18 : vector<64x256xf32>
      %cst_8 = arith.constant 0.000000e+00 : f32
      %20 = vector.broadcast %cst_8 : f32 to vector<64x256xf32>
      %21 = arith.maximumf %19, %20 : vector<64x256xf32>
      %22 = arith.truncf %21 : vector<64x256xf32> to vector<64x256xbf16>
      %c0_9 = arith.constant 0 : index
      %c0_10 = arith.constant 0 : index
      %23 = vector.load %arg7[%c0_9, %c0_10] : memref<32x64xbf16, #tpu.memory_space<vmem>>, vector<32x64xbf16>
      %cst_11 = arith.constant dense<0.000000e+00> : vector<32x256xf32>
      %24 = tpu.matmul %23, %22, %cst_11 {dimension_numbers = #tpu.dot_dimension_numbers<[1], [0], [0], [1], [0, 0, 1, 1], [], []>} : vector<32x64xbf16>, vector<64x256xbf16>, vector<32x256xf32> -> vector<32x256xf32>
      %c0_12 = arith.constant 0 : index
      %c0_13 = arith.constant 0 : index
      %25 = vector.load %arg8[%c0_12, %c0_13] : memref<32x1xf32, #tpu.memory_space<vmem>>, vector<32x1xf32>
      %26 = vector.broadcast %25 : vector<32x1xf32> to vector<32x256xf32>
      %27 = arith.addf %24, %26 : vector<32x256xf32>
      %28 = vector.broadcast %11 : f32 to vector<32x256xf32>
      %29 = arith.mulf %28, %27 : vector<32x256xf32>
      %30 = arith.addf %13, %29 : vector<32x256xf32>
      %c0_14 = arith.constant 0 : index
      %c0_15 = arith.constant 0 : index
      %c0_16 = arith.constant 0 : index
      %31 = vector.load %arg9[%c0_14, %c0_15, %c0_16] : memref<1x32x256xf32, #tpu.memory_space<vmem>>, vector<1x32x256xf32>
      %32 = vector.shape_cast %31 : vector<1x32x256xf32> to vector<32x256xf32>
      %33 = vector.shape_cast %30 : vector<32x256xf32> to vector<1x32x256xf32>
      tpu.vector_store %arg9[%c0_14, %c0_15, %c0_16], %33 {strides = array<i32>} : memref<1x32x256xf32, #tpu.memory_space<vmem>>, vector<1x32x256xf32>,
    } else {
    }
    %5 = arith.index_cast %arg0 : i32 to index
    %6 = memref.load %arg2[%5] : memref<2xi32, #tpu.memory_space<smem>>
    %c0_i32_0 = arith.constant 0 : i32
    %7 = arith.cmpi eq, %6, %c0_i32_0 : i32
    %8 = arith.extui %7 : i1 to i32
    %c0_i32_1 = arith.constant 0 : i32
    %9 = arith.cmpi ne, %8, %c0_i32_1 : i32
    scf.if %9 {
      %c0 = arith.constant 0 : index
      %c0_2 = arith.constant 0 : index
      %c0_3 = arith.constant 0 : index
      %10 = vector.load %arg4[%c0, %c0_2, %c0_3] : memref<1x32x256xf32, #tpu.memory_space<vmem>>, vector<1x32x256xf32>
      %11 = vector.shape_cast %10 : vector<1x32x256xf32> to vector<32x256xf32>
      %c0_4 = arith.constant 0 : index
      %c0_5 = arith.constant 0 : index
      %c0_6 = arith.constant 0 : index
      %12 = vector.load %arg9[%c0_4, %c0_5, %c0_6] : memref<1x32x256xf32, #tpu.memory_space<vmem>>, vector<1x32x256xf32>
      %13 = vector.shape_cast %12 : vector<1x32x256xf32> to vector<32x256xf32>
      %14 = vector.shape_cast %11 : vector<32x256xf32> to vector<1x32x256xf32>
      tpu.vector_store %arg9[%c0_4, %c0_5, %c0_6], %14 {strides = array<i32>} : memref<1x32x256xf32, #tpu.memory_space<vmem>>, vector<1x32x256xf32>,
    } else {
    }
    return
  }
  func.func @transform_0(%arg0: i32, %arg1: i32, %arg2: memref<2xi32, #tpu.memory_space<smem>>, %arg3: memref<2xf32, #tpu.memory_space<smem>>) -> (i32, i32, i32) {
    %c0_i32 = arith.constant 0 : i32
    %c0_i32_0 = arith.constant 0 : i32
    return %arg0, %c0_i32, %arg1 : i32, i32, i32
  }
  func.func @transform_1(%arg0: i32, %arg1: i32, %arg2: memref<2xi32, #tpu.memory_space<smem>>, %arg3: memref<2xf32, #tpu.memory_space<smem>>) -> (i32, i32) {
    %c0_i32 = arith.constant 0 : i32
    %c0_i32_0 = arith.constant 0 : i32
    %c0_i32_1 = arith.constant 0 : i32
    return %c0_i32, %c0_i32_0 : i32, i32
  }
  func.func @transform_2(%arg0: i32, %arg1: i32, %arg2: memref<2xi32, #tpu.memory_space<smem>>, %arg3: memref<2xf32, #tpu.memory_space<smem>>) -> (i32, i32) {
    %c0_i32 = arith.constant 0 : i32
    %c0_i32_0 = arith.constant 0 : i32
    %c0_i32_1 = arith.constant 0 : i32
    return %c0_i32, %c0_i32_0 : i32, i32
  }
  func.func @transform_3(%arg0: i32, %arg1: i32, %arg2: memref<2xi32, #tpu.memory_space<smem>>, %arg3: memref<2xf32, #tpu.memory_space<smem>>) -> (i32, i32) {
    %c0_i32 = arith.constant 0 : i32
    %c0_i32_0 = arith.constant 0 : i32
    %c0_i32_1 = arith.constant 0 : i32
    return %c0_i32, %c0_i32_0 : i32, i32
  }
  func.func @transform_4(%arg0: i32, %arg1: i32, %arg2: memref<2xi32, #tpu.memory_space<smem>>, %arg3: memref<2xf32, #tpu.memory_space<smem>>) -> (i32, i32) {
    %c0_i32 = arith.constant 0 : i32
    %c0_i32_0 = arith.constant 0 : i32
    %c0_i32_1 = arith.constant 0 : i32
    return %c0_i32, %c0_i32_0 : i32, i32
  }
  func.func @transform_5(%arg0: i32, %arg1: i32, %arg2: memref<2xi32, #tpu.memory_space<smem>>, %arg3: memref<2xf32, #tpu.memory_space<smem>>) -> (i32, i32, i32) {
    %c0_i32 = arith.constant 0 : i32
    %c0_i32_0 = arith.constant 0 : i32
    return %arg0, %c0_i32, %arg1 : i32, i32, i32
  }
}

</mosaic_0001>

<llo_original>
// kernel: tpu_custom_call.1
$region0: #{tpu_custom_call.1}
  #allocation0 [shape = 'u32[]', space=smem, size = 0x4, offset = 0x4, fixed_abs, tag = 'smem constant byte address 0x4 - core index']
  #allocation1 [shape = 'u32[144,128]{1,0:T(1,128)}', space=vmem, size = 0x12000, scoped, tag = 'internal scratch']
  #allocation2 [shape = 's32[1]{0}', space=sflag, size = 0x4, scoped, tag = 'scoped memory for tpu_custom_call.1']
  #allocation3 [shape = 'u8[512]{0}', space=smem, size = 0x200, scoped, tag = 'prefetched SMEM operand 0']
  #allocation4 [shape = 'u8[512]{0}', space=smem, size = 0x200, scoped, tag = 'prefetched SMEM operand 1']
  %s0 = inlined_call_operand.vmem [shape: s32[2], index: 0, kind: input, shape index: {}]
  %s1 = inlined_call_operand.vmem [shape: f32[2], index: 1, kind: input, shape index: {}]
  %s2 = inlined_call_operand.vmem [shape: f32[2,32,256], index: 2, kind: input, shape index: {}]
  %s3 = inlined_call_operand.vmem [shape: bf16[64,32], index: 3, kind: input, shape index: {}]
  %s4 = inlined_call_operand.vmem [shape: f32[64,1], index: 4, kind: input, shape index: {}]
  %s5 = inlined_call_operand.vmem [shape: bf16[32,64], index: 5, kind: input, shape index: {}]
  %s6 = inlined_call_operand.vmem [shape: f32[32,1], index: 6, kind: input, shape index: {}]
  %s7 = inlined_call_operand.hbm [shape: f32[2,32,256], index: 7, kind: output, shape index: {}]
  %s8 = sld [smem:[#allocation0]]
  $region61: #{tpu_custom_call.1} parent=0
    _
  %s10 = ssub.s32 1, %s8
  %s11 = scalar_select 0, %s10, %s8
  %s12 = sshll.u32 %s0, 4
  %s13 = int_to_ptr.vmem [resolvable:$true] %s12
  %15 = dma.vmem_to_smem %s13, 16, [#allocation3], [#allocation2]
  %s16 = sshll.u32 %s1, 4
  %s17 = int_to_ptr.vmem [resolvable:$true] %s16
  %19 = dma.vmem_to_smem %s17, 16, [#allocation4], [#allocation2]
  %20 = dma.done [#allocation2], 32
  %21 = sfence
  $region1: #{tpu_custom_call.1} parent=0
    #allocation5 [shape = 'u8[65536]{0}', space=vmem, size = 0x10000, scoped, tag = 'output window, operand 0']
    #allocation6 [shape = 's32[2]{0}', space=sflag, size = 0x8, scoped, tag = 'scoped memory for tpu_custom_call.1']
    %22 = vsyncpa [#allocation6], 0
    %s23 = scalar_lea.sflag [#allocation6], 1
    %24 = vsyncpa %s23, 0
    loop: start=0, step=1, limit=4
    $region2: #{tpu_custom_call.1} parent=1 // loop_pre_header
      _
    $region3: #{tpu_custom_call.1} parent=1 // loop_header
      %s26 = sphi 0, %s30
      %p27 = scmp.ge.s32.totalorder %s26, 4
      %s33 = sphi 0, %s45
      %s34 = sphi 0, %s41
      %s35 = sphi 0, %s33
      %s36 = sphi 0, %s34
      %s37 = sphi 0, %s35
      %s38 = sphi 0, %s36
      %s50 = sphi 0, %s52
      %s53 = sphi 0, %s50
      %s54 = sphi 0, %s53
      %s70 = sphi 0, %s54
      %s74 = sphi 0, %s74
      %s76 = sphi 0, %s74
      %s77 = sphi 0, %s76
      %s91 = sphi 0, %s77
      %s95 = sphi 0, %s95
      %s97 = sphi 0, %s95
      %s98 = sphi 0, %s97
      %s112 = sphi 0, %s98
      %s116 = sphi 0, %s116
      %s118 = sphi 0, %s116
      %s119 = sphi 0, %s118
      %s133 = sphi 0, %s119
      %s137 = sphi 0, %s137
      %s139 = sphi 0, %s137
      %s140 = sphi 0, %s139
      %s154 = sphi 0, %s140
      %s162 = sphi 0, %s164
      %s165 = sphi 0, %s162
      %s166 = sphi 0, %s165
      %s182 = sphi 0, %s166
    $region4: #{tpu_custom_call.1} parent=1 // loop_header_branch
      %29 = sbr.rel (%p27) target = $region8
    $region5: #{tpu_custom_call.1} parent=1 // loop_body
      %s31 = ssub.s32 %s26, 1
      %s32 = ssub.s32 %s26, 2
      %s39 = sadd.s32 1, %s34
      %p40 = scmp.ge.s32.totalorder %s39, 1
      %s41 = scalar_select %p40, 0, %s39
      %s42 = sadd.s32 1, %s33
      %s43 = scalar_select %p40, %s42, %s33
      %p44 = scmp.ge.s32.totalorder %s43, 2
      %s45 = scalar_select %p44, 0, %s43
      %s46 = ssub.s32 %s33, %s45
      %s47 = ssub.s32 %s34, %s41
      %s48 = sor.u32 %s46, %s47
      %p49 = scmp.eq.s32.totalorder %s48, 0
      %s51 = sadd.s32 %s50, 1
      %s52 = scalar_select %p49, %s50, %s51
      %p55 = pneg %p49
      %p56 = scmp.eq.s32.totalorder %s26, 1
      %p57 = por %p55, %p56
      %p58 = scmp.ne.s32.totalorder %s50, %s53
      %p59 = scmp.eq.s32.totalorder %s26, 0
      %p60 = por %p58, %p59
      %p61 = scmp.ne.s32.totalorder %s50, %s53
      %p62 = scmp.eq.s32.totalorder %s31, 1
      %p63 = por %p61, %p62
      %p64 = scmp.ne.s32.totalorder %s53, %s54
      %p65 = scmp.eq.s32.totalorder %s31, 0
      %p66 = por %p64, %p65
      %p67 = scmp.ne.s32.totalorder %s53, %s54
      %p68 = scmp.eq.s32.totalorder %s32, 1
      %p69 = por %p67, %p68
      %p71 = scmp.ne.s32.totalorder %s54, %s70
      %p72 = scmp.eq.s32.totalorder %s32, 0
      %p73 = por %p71, %p72
      %s75 = sadd.s32 %s74, 1
      %p78 = scmp.eq.s32.totalorder %s26, 1
      %p79 = scmp.ne.s32.totalorder %s74, %s76
      %p80 = scmp.eq.s32.totalorder %s26, 0
      %p81 = por %p79, %p80
      %p82 = scmp.ne.s32.totalorder %s74, %s76
      %p83 = scmp.eq.s32.totalorder %s31, 1
      %p84 = por %p82, %p83
      %p85 = scmp.ne.s32.totalorder %s76, %s77
      %p86 = scmp.eq.s32.totalorder %s31, 0
      %p87 = por %p85, %p86
      %p88 = scmp.ne.s32.totalorder %s76, %s77
      %p89 = scmp.eq.s32.totalorder %s32, 1
      %p90 = por %p88, %p89
      %p92 = scmp.ne.s32.totalorder %s77, %s91
      %p93 = scmp.eq.s32.totalorder %s32, 0
      %p94 = por %p92, %p93
      %s96 = sadd.s32 %s95, 1
      %p99 = scmp.eq.s32.totalorder %s26, 1
      %p100 = scmp.ne.s32.totalorder %s95, %s97
      %p101 = scmp.eq.s32.totalorder %s26, 0
      %p102 = por %p100, %p101
      %p103 = scmp.ne.s32.totalorder %s95, %s97
      %p104 = scmp.eq.s32.totalorder %s31, 1
      %p105 = por %p103, %p104
      %p106 = scmp.ne.s32.totalorder %s97, %s98
      %p107 = scmp.eq.s32.totalorder %s31, 0
      %p108 = por %p106, %p107
      %p109 = scmp.ne.s32.totalorder %s97, %s98
      %p110 = scmp.eq.s32.totalorder %s32, 1
      %p111 = por %p109, %p110
      %p113 = scmp.ne.s32.totalorder %s98, %s112
      %p114 = scmp.eq.s32.totalorder %s32, 0
      %p115 = por %p113, %p114
      %s117 = sadd.s32 %s116, 1
      %p120 = scmp.eq.s32.totalorder %s26, 1
      %p121 = scmp.ne.s32.totalorder %s116, %s118
      %p122 = scmp.eq.s32.totalorder %s26, 0
      %p123 = por %p121, %p122
      %p124 = scmp.ne.s32.totalorder %s116, %s118
      %p125 = scmp.eq.s32.totalorder %s31, 1
      %p126 = por %p124, %p125
      %p127 = scmp.ne.s32.totalorder %s118, %s119
      %p128 = scmp.eq.s32.totalorder %s31, 0
      %p129 = por %p127, %p128
      %p130 = scmp.ne.s32.totalorder %s118, %s119
      %p131 = scmp.eq.s32.totalorder %s32, 1
      %p132 = por %p130, %p131
      %p134 = scmp.ne.s32.totalorder %s119, %s133
      %p135 = scmp.eq.s32.totalorder %s32, 0
      %p136 = por %p134, %p135
      %s138 = sadd.s32 %s137, 1
      %p141 = scmp.eq.s32.totalorder %s26, 1
      %p142 = scmp.ne.s32.totalorder %s137, %s139
      %p143 = scmp.eq.s32.totalorder %s26, 0
      %p144 = por %p142, %p143
      %p145 = scmp.ne.s32.totalorder %s137, %s139
      %p146 = scmp.eq.s32.totalorder %s31, 1
      %p147 = por %p145, %p146
      %p148 = scmp.ne.s32.totalorder %s139, %s140
      %p149 = scmp.eq.s32.totalorder %s31, 0
      %p150 = por %p148, %p149
      %p151 = scmp.ne.s32.totalorder %s139, %s140
      %p152 = scmp.eq.s32.totalorder %s32, 1
      %p153 = por %p151, %p152
      %p155 = scmp.ne.s32.totalorder %s140, %s154
      %p156 = scmp.eq.s32.totalorder %s32, 0
      %p157 = por %p155, %p156
      %s158 = ssub.s32 %s33, %s45
      %s159 = ssub.s32 %s34, %s41
      %s160 = sor.u32 %s158, %s159
      %p161 = scmp.eq.s32.totalorder %s160, 0
      %s163 = sadd.s32 %s162, 1
      %s164 = scalar_select %p161, %s162, %s163
      %p167 = pneg %p161
      %p168 = scmp.eq.s32.totalorder %s26, 1
      %p169 = por %p167, %p168
      %p170 = scmp.ne.s32.totalorder %s162, %s165
      %p171 = scmp.eq.s32.totalorder %s26, 0
      %p172 = por %p170, %p171
      %p173 = scmp.ne.s32.totalorder %s162, %s165
      %p174 = scmp.eq.s32.totalorder %s31, 1
      %p175 = por %p173, %p174
      %p176 = scmp.ne.s32.totalorder %s165, %s166
      %p177 = scmp.eq.s32.totalorder %s31, 0
      %p178 = por %p176, %p177
      %p179 = scmp.ne.s32.totalorder %s165, %s166
      %p180 = scmp.eq.s32.totalorder %s32, 1
      %p181 = por %p179, %p180
      %p183 = scmp.ne.s32.totalorder %s166, %s182
      %p184 = scmp.eq.s32.totalorder %s32, 0
      %p185 = por %p183, %p184
      %p186 = scmp.le.s32.totalorder 1, %s26
      %p187 = scmp.lt.s32.totalorder %s26, 3
      %p188 = pnand %p186, %p187
      %p189 = pneg %p188
      // Predicated region
      $region9: #{tpu_custom_call.1} parent=5 // pred_check
        _
      $region10: #{tpu_custom_call.1} parent=5 // pred_check_branch
        %191 = sbr.rel (%p188) target = $region12
      $region11: #{tpu_custom_call.1} parent=5 // pred_region
        %s192 = ssub.s32 %s26, 1
        // Predicated region
        $region13: #{tpu_custom_call.1} parent=11 // pred_check
          %p193 = pneg %p87
        $region14: #{tpu_custom_call.1} parent=11 // pred_check_branch
          %195 = sbr.rel (%p193) target = $region16
        $region15: #{tpu_custom_call.1} parent=11 // pred_region
          _
        $region16: #{tpu_custom_call.1} parent=11 // pred_fallthru
          _
        // Predicated region
        $region17: #{tpu_custom_call.1} parent=11 // pred_check
          %p196 = pneg %p108
        $region18: #{tpu_custom_call.1} parent=11 // pred_check_branch
          %198 = sbr.rel (%p196) target = $region20
        $region19: #{tpu_custom_call.1} parent=11 // pred_region
          _
        $region20: #{tpu_custom_call.1} parent=11 // pred_fallthru
          _
        // Predicated region
        $region21: #{tpu_custom_call.1} parent=11 // pred_check
          %p199 = pneg %p129
        $region22: #{tpu_custom_call.1} parent=11 // pred_check_branch
          %201 = sbr.rel (%p199) target = $region24
        $region23: #{tpu_custom_call.1} parent=11 // pred_region
          _
        $region24: #{tpu_custom_call.1} parent=11 // pred_fallthru
          _
        // Predicated region
        $region25: #{tpu_custom_call.1} parent=11 // pred_check
          %p202 = pneg %p150
        $region26: #{tpu_custom_call.1} parent=11 // pred_check_branch
          %204 = sbr.rel (%p202) target = $region28
        $region27: #{tpu_custom_call.1} parent=11 // pred_region
          _
        $region28: #{tpu_custom_call.1} parent=11 // pred_fallthru
          _
      $region12: #{tpu_custom_call.1} parent=5 // pred_fallthru
        _
      %p205 = scmp.lt.s32.totalorder %s26, 2
      // Predicated region
      $region29: #{tpu_custom_call.1} parent=5 // pred_check
        %p206 = pneg %p205
      $region30: #{tpu_custom_call.1} parent=5 // pred_check_branch
        %208 = sbr.rel (%p206) target = $region32
      $region31: #{tpu_custom_call.1} parent=5 // pred_region
        // Predicated region
        $region33: #{tpu_custom_call.1} parent=31 // pred_check
          %p209 = pneg %p60
        $region34: #{tpu_custom_call.1} parent=31 // pred_check_branch
          %211 = sbr.rel (%p209) target = $region36
        $region35: #{tpu_custom_call.1} parent=31 // pred_region
          %s212 = smul.u32 2, %s34
          %p213 = scmp.lt.s32.totalorder %s33, 1
          %s214 = scalar_select %p213, %s33, 1
          %p215 = scmp.lt.s32.totalorder %s212, 1
          %s216 = scalar_select %p215, %s212, 1
          %s217 = smul.addr %s214, 8
          %s218 = sadd.s32 %s216, %s217
          %s219 = smul.addr %s218, 8
          %s220 = scalar_lea.vmem %s2, %s219
          %s221 = smul.u32 2, %s34
        $region36: #{tpu_custom_call.1} parent=31 // pred_fallthru
          _
      $region32: #{tpu_custom_call.1} parent=5 // pred_fallthru
        _
      %p222 = scmp.le.s32.totalorder 1, %s26
      %p223 = scmp.lt.s32.totalorder %s26, 3
      %p224 = pnand %p222, %p223
      %p225 = pneg %p224
      // Predicated region
      $region37: #{tpu_custom_call.1} parent=5 // pred_check
        _
      $region38: #{tpu_custom_call.1} parent=5 // pred_check_branch
        %227 = sbr.rel (%p224) target = $region40
      $region39: #{tpu_custom_call.1} parent=5 // pred_region
        %s228 = ssub.s32 %s26, 1
        %s229 = smul.u32 2, %s36
        %p230 = scmp.lt.s32.totalorder %s35, 1
        %s231 = scalar_select %p230, %s35, 1
        %p232 = scmp.lt.s32.totalorder %s229, 1
        %s233 = scalar_select %p232, %s229, 1
        %s234 = smul.addr %s231, 8
        %s235 = sadd.s32 %s233, %s234
        %s236 = smul.addr %s235, 8
        %s237 = scalar_lea.vmem %s2, %s236
        %p238 = pneg %p66
        %p239 = pneg %p63
        %p240 = pneg %p87
        %p241 = pneg %p84
        %p242 = pneg %p108
        %p243 = pneg %p105
        %p244 = pneg %p129
        %p245 = pneg %p126
        %p246 = pneg %p150
        %p247 = pneg %p147
        %p248 = pneg %p178
        %p249 = pneg %p175
        %s250 = sand.u32 %s165, 1
        %s251 = scalar_lea.sflag [#allocation6], %s250
        %s252 = sand.u32 %s165, 1
        %s253 = smul.addr %s252, 64
        %s254 = scalar_lea.vmem [#allocation5], %s253
        %s255 = smul.u32 2, %s36
        %p256 = scmp.lt.s32.totalorder %s35, 1
        %s257 = scalar_select %p256, %s35, 1
        %p258 = scmp.lt.s32.totalorder %s255, 1
        %s259 = scalar_select %p258, %s255, 1
        %s260 = smul.addr %s257, 8
        %s261 = sadd.s32 %s259, %s260
        %s262 = smul.addr %s261, 8
        %s263 = scalar_lea.vmem %s2, %s262
        %s264 = smul.u32 2, %s36
        %s265 = smul.u32 2, %s36
        %s267 = sld [smem:[#allocation3 + %s35]]
        %p268 = scmp.eq.s32.totalorder %s267, 1
        // Predicated region
        $region41: #{tpu_custom_call.1} parent=39 // pred_check
          %p269 = pneg %p268
        $region42: #{tpu_custom_call.1} parent=39 // pred_check_branch
          %271 = sbr.rel (%p269) target = $region44
        $region43: #{tpu_custom_call.1} parent=39 // pred_region
          %s272 = sld [smem:[#allocation4 + %s35]]
          %v273 = vld [vmem:[%s263] sm:$0xff]
          %v274 = vld [vmem:[%s263 + $0x8] sm:$0xff]
          %v275 = vld [vmem:[%s263 + $0x10] sm:$0xff]
          %v276 = vld [vmem:[%s263 + $0x18] sm:$0xff]
          %v277 = vld [vmem:[%s263 + $0x20] sm:$0xff]
          %v278 = vld [vmem:[%s263 + $0x28] sm:$0xff]
          %v279 = vld [vmem:[%s263 + $0x30] sm:$0xff]
          %v280 = vld [vmem:[%s263 + $0x38] sm:$0xff]
          %v281 = vpack.c.bf16 %v275, %v273
          %v282 = vpack.c.bf16 %v276, %v274
          %v283 = vpack.c.bf16 %v279, %v277
          %v284 = vpack.c.bf16 %v280, %v278
          %v285 = vld [vmem:[%s3] sm:$0xf]
          %v286 = vld [vmem:[%s3 + $0x4] sm:$0xf]
          %v287 = vld [vmem:[%s3 + $0x8] sm:$0xf]
          %v288 = vld [vmem:[%s3 + $0xc] sm:$0xf]
          %v289 = vld [vmem:[%s3 + $0x10] sm:$0xf]
          %v290 = vld [vmem:[%s3 + $0x14] sm:$0xf]
          %v291 = vld [vmem:[%s3 + $0x18] sm:$0xf]
          %v292 = vld [vmem:[%s3 + $0x1c] sm:$0xf]
          %v293 = vld [vmem:[%s4] sm:$0xff]
          %v294 = vld [vmem:[%s4 + $0x8] sm:$0xff]
          %v295 = vld [vmem:[%s4 + $0x10] sm:$0xff]
          %v296 = vld [vmem:[%s4 + $0x18] sm:$0xff]
          %v297 = vld [vmem:[%s4 + $0x20] sm:$0xff]
          %v298 = vld [vmem:[%s4 + $0x28] sm:$0xff]
          %v299 = vld [vmem:[%s4 + $0x30] sm:$0xff]
          %v300 = vld [vmem:[%s4 + $0x38] sm:$0xff]
          %302 = vset.pattern.permute.xlu0 0
          %303 = vperm.xlu0 %302, %v293
          %v304 = vpop.permute.xlu0 %303
          %307 = vset.pattern.permute.xlu0 0
          %308 = vperm.xlu0 %307, %v294
          %v309 = vpop.permute.xlu0 %308
          %312 = vset.pattern.permute.xlu0 0
          %313 = vperm.xlu0 %312, %v295
          %v314 = vpop.permute.xlu0 %313
          %317 = vset.pattern.permute.xlu0 0
          %318 = vperm.xlu0 %317, %v296
          %v319 = vpop.permute.xlu0 %318
          %322 = vset.pattern.permute.xlu0 0
          %323 = vperm.xlu0 %322, %v297
          %v324 = vpop.permute.xlu0 %323
          %327 = vset.pattern.permute.xlu0 0
          %328 = vperm.xlu0 %327, %v298
          %v329 = vpop.permute.xlu0 %328
          %332 = vset.pattern.permute.xlu0 0
          %333 = vperm.xlu0 %332, %v299
          %v334 = vpop.permute.xlu0 %333
          %337 = vset.pattern.permute.xlu0 0
          %338 = vperm.xlu0 %337, %v300
          %v339 = vpop.permute.xlu0 %338
          %v349 = vunpack.c.l.b16 %v285
          %v350 = vunpack.c.l.b16 %v286
          %v351 = vunpack.c.l.b16 %v287
          %v352 = vunpack.c.l.b16 %v288
          %v353 = vunpack.c.l.b16 %v289
          %v354 = vunpack.c.l.b16 %v290
          %v355 = vunpack.c.l.b16 %v291
          %v356 = vunpack.c.l.b16 %v292
          %v357 = vpack.c.b16 %v350, %v349
          %v358 = vpack.c.b16 %v352, %v351
          %v359 = vpack.c.b16 %v354, %v353
          %v360 = vpack.c.b16 %v356, %v355
          %vm361 = vcmask 261120
          %v363 = vsel %vm361, %v357, 0
          %v366 = vsel %vm361, %v358, 0
          %v369 = vsel %vm361, %v359, 0
          %v372 = vsel %vm361, %v360, 0
          %374 = vmatprep.subr.bf16.mxu0 %v282
          %375 = vmatpush1.bf16.msra.mxu0 %v281
          %376 = vmatprep.subr.bf16.mxu0 %v284
          %377 = vmatpush1.bf16.msra.mxu0 %v283
          %378 = vmatprep.subr.bf16.mxu0 0
          %379 = vmatpush1.bf16.msra.mxu0 0
          %380 = vmatprep.subr.bf16.mxu0 0
          %381 = vmatpush1.bf16.msra.mxu0 0
          %382 = vmatprep.subr.bf16.mxu0 0
          %383 = vmatpush1.bf16.msra.mxu0 0
          %384 = vmatprep.subr.bf16.mxu0 0
          %385 = vmatpush1.bf16.msra.mxu0 0
          %386 = vmatprep.subr.bf16.mxu0 0
          %387 = vmatpush1.bf16.msra.mxu0 0
          %388 = vmatprep.subr.bf16.mxu0 0
          %389 = vmatpush1.bf16.msra.mxu0 0
          %390 = vmatprep.subr.bf16.mxu0 0
          %391 = vmatpush1.bf16.msra.mxu0 0
          %392 = vmatprep.subr.bf16.mxu0 0
          %393 = vmatpush1.bf16.msra.mxu0 0
          %394 = vmatprep.subr.bf16.mxu0 0
          %395 = vmatpush1.bf16.msra.mxu0 0
          %396 = vmatprep.subr.bf16.mxu0 0
          %397 = vmatpush1.bf16.msra.mxu0 0
          %398 = vmatprep.subr.bf16.mxu0 0
          %399 = vmatpush1.bf16.msra.mxu0 0
          %400 = vmatprep.subr.bf16.mxu0 0
          %401 = vmatpush1.bf16.msra.mxu0 0
          %402 = vmatprep.subr.bf16.mxu0 0
          %403 = vmatpush1.bf16.msra.mxu0 0
          %404 = vmatprep.subr.bf16.mxu0 0
          %405 = vmatpush1.bf16.msra.mxu0 0
          %406 = vmatprep.mubr.bf16.mxu0 0
          %407 = vmatmul.mubr.bf16.gmra.mrb[0].mxu0 %v363
          %v408 = vpop.f32.mrb[0].mxu0
          %v409 = vadd.f32 %v304, %v408
          %v410 = vpop.f32.mrb[0].mxu0
          %v411 = vadd.f32 %v304, %v410
          %v412 = vpop.f32.mrb[0].mxu0
          %v413 = vadd.f32 %v309, %v412
          %v414 = vpop.f32.mrb[0].mxu0
          %v415 = vadd.f32 %v309, %v414
          %416 = vmatprep.mubr.bf16.mxu0 0
          %417 = vmatmul.mubr.bf16.gmra.mrb[0].mxu0 %v366
          %v418 = vpop.f32.mrb[0].mxu0
          %v419 = vadd.f32 %v314, %v418
          %v420 = vpop.f32.mrb[0].mxu0
          %v421 = vadd.f32 %v314, %v420
          %v422 = vpop.f32.mrb[0].mxu0
          %v423 = vadd.f32 %v319, %v422
          %v424 = vpop.f32.mrb[0].mxu0
          %v425 = vadd.f32 %v319, %v424
          %426 = vmatprep.mubr.bf16.mxu0 0
          %427 = vmatmul.mubr.bf16.gmra.mrb[0].mxu0 %v369
          %v428 = vpop.f32.mrb[0].mxu0
          %v429 = vadd.f32 %v324, %v428
          %v430 = vpop.f32.mrb[0].mxu0
          %v431 = vadd.f32 %v324, %v430
          %v432 = vpop.f32.mrb[0].mxu0
          %v433 = vadd.f32 %v329, %v432
          %v434 = vpop.f32.mrb[0].mxu0
          %v435 = vadd.f32 %v329, %v434
          %436 = vmatprep.mubr.bf16.mxu0 0
          %437 = vmatmul.mubr.bf16.gmra.mrb[0].mxu0 %v372
          %v438 = vpop.f32.mrb[0].mxu0
          %v439 = vadd.f32 %v334, %v438
          %v440 = vpop.f32.mrb[0].mxu0
          %v441 = vadd.f32 %v334, %v440
          %v442 = vpop.f32.mrb[0].mxu0
          %v443 = vadd.f32 %v339, %v442
          %v444 = vpop.f32.mrb[0].mxu0
          %v445 = vadd.f32 %v339, %v444
          %446 = vdwg.mxu0
          %v447 = vmax.f32 %v409, 0.0
          %v448 = vmax.f32 %v411, 0.0
          %v449 = vmax.f32 %v413, 0.0
          %v450 = vmax.f32 %v415, 0.0
          %v451 = vmax.f32 %v419, 0.0
          %v452 = vmax.f32 %v421, 0.0
          %v453 = vmax.f32 %v423, 0.0
          %v454 = vmax.f32 %v425, 0.0
          %v455 = vmax.f32 %v429, 0.0
          %v456 = vmax.f32 %v431, 0.0
          %v457 = vmax.f32 %v433, 0.0
          %v458 = vmax.f32 %v435, 0.0
          %v459 = vmax.f32 %v439, 0.0
          %v460 = vmax.f32 %v441, 0.0
          %v461 = vmax.f32 %v443, 0.0
          %v462 = vmax.f32 %v445, 0.0
          %v463 = vpack.c.bf16 %v449, %v447
          %v464 = vpack.c.bf16 %v450, %v448
          %v465 = vpack.c.bf16 %v453, %v451
          %v466 = vpack.c.bf16 %v454, %v452
          %v467 = vpack.c.bf16 %v457, %v455
          %v468 = vpack.c.bf16 %v458, %v456
          %v469 = vpack.c.bf16 %v461, %v459
          %v470 = vpack.c.bf16 %v462, %v460
          %v471 = vld [vmem:[%s5] sm:$0xf]
          %v472 = vld [vmem:[%s5 + $0x4] sm:$0xf]
          %v473 = vld [vmem:[%s5 + $0x8] sm:$0xf]
          %v474 = vld [vmem:[%s5 + $0xc] sm:$0xf]
          %v475 = vld [vmem:[%s6] sm:$0xff]
          %v476 = vld [vmem:[%s6 + $0x8] sm:$0xff]
          %v477 = vld [vmem:[%s6 + $0x10] sm:$0xff]
          %v478 = vld [vmem:[%s6 + $0x18] sm:$0xff]
          %480 = vset.pattern.permute.xlu0 0
          %481 = vperm.xlu0 %480, %v475
          %v482 = vpop.permute.xlu0 %481
          %485 = vset.pattern.permute.xlu0 0
          %486 = vperm.xlu0 %485, %v476
          %v487 = vpop.permute.xlu0 %486
          %490 = vset.pattern.permute.xlu0 0
          %491 = vperm.xlu0 %490, %v477
          %v492 = vpop.permute.xlu0 %491
          %495 = vset.pattern.permute.xlu0 0
          %496 = vperm.xlu0 %495, %v478
          %v497 = vpop.permute.xlu0 %496
          %v503 = vunpack.c.l.b16 %v471
          %v504 = vunpack.c.l.b16 %v472
          %v505 = vunpack.c.l.b16 %v473
          %v506 = vunpack.c.l.b16 %v474
          %v507 = vpack.c.b16 %v504, %v503
          %v508 = vpack.c.b16 %v506, %v505
          %vm509 = vcmask 523264
          %v511 = vsel %vm509, %v507, 0
          %v514 = vsel %vm509, %v508, 0
          %516 = vmatprep.subr.bf16.mxu0 %v464
          %517 = vmatpush1.bf16.msra.mxu0 %v463
          %518 = vmatprep.subr.bf16.mxu0 %v466
          %519 = vmatpush1.bf16.msra.mxu0 %v465
          %520 = vmatprep.subr.bf16.mxu0 %v468
          %521 = vmatpush1.bf16.msra.mxu0 %v467
          %522 = vmatprep.subr.bf16.mxu0 %v470
          %523 = vmatpush1.bf16.msra.mxu0 %v469
          %524 = vmatprep.subr.bf16.mxu0 0
          %525 = vmatpush1.bf16.msra.mxu0 0
          %526 = vmatprep.subr.bf16.mxu0 0
          %527 = vmatpush1.bf16.msra.mxu0 0
          %528 = vmatprep.subr.bf16.mxu0 0
          %529 = vmatpush1.bf16.msra.mxu0 0
          %530 = vmatprep.subr.bf16.mxu0 0
          %531 = vmatpush1.bf16.msra.mxu0 0
          %532 = vmatprep.subr.bf16.mxu0 0
          %533 = vmatpush1.bf16.msra.mxu0 0
          %534 = vmatprep.subr.bf16.mxu0 0
          %535 = vmatpush1.bf16.msra.mxu0 0
          %536 = vmatprep.subr.bf16.mxu0 0
          %537 = vmatpush1.bf16.msra.mxu0 0
          %538 = vmatprep.subr.bf16.mxu0 0
          %539 = vmatpush1.bf16.msra.mxu0 0
          %540 = vmatprep.subr.bf16.mxu0 0
          %541 = vmatpush1.bf16.msra.mxu0 0
          %542 = vmatprep.subr.bf16.mxu0 0
          %543 = vmatpush1.bf16.msra.mxu0 0
          %544 = vmatprep.subr.bf16.mxu0 0
          %545 = vmatpush1.bf16.msra.mxu0 0
          %546 = vmatprep.subr.bf16.mxu0 0
          %547 = vmatpush1.bf16.msra.mxu0 0
          %548 = vmatprep.mubr.bf16.mxu0 0
          %549 = vmatmul.mubr.bf16.gmra.mrb[0].mxu0 %v511
          %v550 = vpop.f32.mrb[0].mxu0
          %v551 = vadd.f32 %v482, %v550
          %v552 = vpop.f32.mrb[0].mxu0
          %v553 = vadd.f32 %v482, %v552
          %v554 = vpop.f32.mrb[0].mxu0
          %v555 = vadd.f32 %v487, %v554
          %v556 = vpop.f32.mrb[0].mxu0
          %v557 = vadd.f32 %v487, %v556
          %558 = vmatprep.mubr.bf16.mxu0 0
          %559 = vmatmul.mubr.bf16.gmra.mrb[0].mxu0 %v514
          %v560 = vpop.f32.mrb[0].mxu0
          %v561 = vadd.f32 %v492, %v560
          %v562 = vpop.f32.mrb[0].mxu0
          %v563 = vadd.f32 %v492, %v562
          %v564 = vpop.f32.mrb[0].mxu0
          %v565 = vadd.f32 %v497, %v564
          %v566 = vpop.f32.mrb[0].mxu0
          %v567 = vadd.f32 %v497, %v566
          %568 = vdwg.mxu0
          %v569 = vstv %s272
          %v570 = vmul.f32 %v569, %v551
          %v571 = vmul.f32 %v569, %v553
          %v572 = vmul.f32 %v569, %v555
          %v573 = vmul.f32 %v569, %v557
          %v574 = vmul.f32 %v569, %v561
          %v575 = vmul.f32 %v569, %v563
          %v576 = vmul.f32 %v569, %v565
          %v577 = vmul.f32 %v569, %v567
          %v578 = vadd.f32 %v273, %v570
          %v579 = vadd.f32 %v274, %v571
          %v580 = vadd.f32 %v275, %v572
          %v581 = vadd.f32 %v276, %v573
          %v582 = vadd.f32 %v277, %v574
          %v583 = vadd.f32 %v278, %v575
          %v584 = vadd.f32 %v279, %v576
          %v585 = vadd.f32 %v280, %v577
          %586 = vst [vmem:[%s254] sm:$0xff] %v578
          %587 = vst [vmem:[%s254 + $0x8] sm:$0xff] %v579
          %588 = vst [vmem:[%s254 + $0x10] sm:$0xff] %v580
          %589 = vst [vmem:[%s254 + $0x18] sm:$0xff] %v581
          %590 = vst [vmem:[%s254 + $0x20] sm:$0xff] %v582
          %591 = vst [vmem:[%s254 + $0x28] sm:$0xff] %v583
          %592 = vst [vmem:[%s254 + $0x30] sm:$0xff] %v584
          %593 = vst [vmem:[%s254 + $0x38] sm:$0xff] %v585
        $region44: #{tpu_custom_call.1} parent=39 // pred_fallthru
          _
        %s594 = sld [smem:[#allocation3 + %s35]]
        %p595 = scmp.eq.s32.totalorder %s594, 0
        // Predicated region
        $region45: #{tpu_custom_call.1} parent=39 // pred_check
          %p596 = pneg %p595
        $region46: #{tpu_custom_call.1} parent=39 // pred_check_branch
          %598 = sbr.rel (%p596) target = $region48
        $region47: #{tpu_custom_call.1} parent=39 // pred_region
          %v599 = vld [vmem:[%s263] sm:$0xff]
          %v600 = vld [vmem:[%s263 + $0x8] sm:$0xff]
          %v601 = vld [vmem:[%s263 + $0x10] sm:$0xff]
          %v602 = vld [vmem:[%s263 + $0x18] sm:$0xff]
          %v603 = vld [vmem:[%s263 + $0x20] sm:$0xff]
          %v604 = vld [vmem:[%s263 + $0x28] sm:$0xff]
          %v605 = vld [vmem:[%s263 + $0x30] sm:$0xff]
          %v606 = vld [vmem:[%s263 + $0x38] sm:$0xff]
          %607 = vst [vmem:[%s254] sm:$0xff] %v599
          %608 = vst [vmem:[%s254 + $0x8] sm:$0xff] %v600
          %609 = vst [vmem:[%s254 + $0x10] sm:$0xff] %v601
          %610 = vst [vmem:[%s254 + $0x18] sm:$0xff] %v602
          %611 = vst [vmem:[%s254 + $0x20] sm:$0xff] %v603
          %612 = vst [vmem:[%s254 + $0x28] sm:$0xff] %v604
          %613 = vst [vmem:[%s254 + $0x30] sm:$0xff] %v605
          %614 = vst [vmem:[%s254 + $0x38] sm:$0xff] %v606
        $region48: #{tpu_custom_call.1} parent=39 // pred_fallthru
          _
        %s615 = sand.u32 %s165, 1
        %s616 = scalar_lea.sflag [#allocation6], %s615
        %s617 = sand.u32 %s165, 1
        %s618 = smul.addr %s617, 64
        %s619 = scalar_lea.vmem [#allocation5], %s618
        // Predicated region
        $region49: #{tpu_custom_call.1} parent=39 // pred_check
          %p620 = pneg %p175
        $region50: #{tpu_custom_call.1} parent=39 // pred_check_branch
          %622 = sbr.rel (%p620) target = $region52
        $region51: #{tpu_custom_call.1} parent=39 // pred_region
          %s623 = smul.u32 2, %s36
          %s625 = ssub.s32 1024, 1024
          %626 = vsyncadd %s616, %s625
          %s627 = smul.addr %s35, 8
          %s628 = sadd.s32 %s623, %s627
          %s629 = smul.addr %s628, 128
          %s630 = scalar_lea.hbm %s7, %s629
          %s631 = sshll.u32 %s619, 4
          %s632 = int_to_ptr.vmem [resolvable:$true] %s631
          %637 = dma.vmem_to_hbm [thread:$0]  %s632, 1024, %s630, %s616, 256, 256, 16
        $region52: #{tpu_custom_call.1} parent=39 // pred_fallthru
          _
      $region40: #{tpu_custom_call.1} parent=5 // pred_fallthru
        _
      %p638 = scmp.le.s32.totalorder 2, %s26
      // Predicated region
      $region53: #{tpu_custom_call.1} parent=5 // pred_check
        %p639 = pneg %p638
      $region54: #{tpu_custom_call.1} parent=5 // pred_check_branch
        %641 = sbr.rel (%p639) target = $region56
      $region55: #{tpu_custom_call.1} parent=5 // pred_region
        %s642 = ssub.s32 %s26, 2
        // Predicated region
        $region57: #{tpu_custom_call.1} parent=55 // pred_check
          %p643 = pneg %p181
        $region58: #{tpu_custom_call.1} parent=55 // pred_check_branch
          %645 = sbr.rel (%p643) target = $region60
        $region59: #{tpu_custom_call.1} parent=55 // pred_region
          %s646 = sand.u32 %s166, 1
          %s647 = scalar_lea.sflag [#allocation6], %s646
          %s648 = sand.u32 %s166, 1
          %s649 = smul.addr %s648, 64
          %s650 = scalar_lea.vmem [#allocation5], %s649
          %651 = dma.done %s647, 1024
        $region60: #{tpu_custom_call.1} parent=55 // pred_fallthru
          _
      $region56: #{tpu_custom_call.1} parent=5 // pred_fallthru
        _
    $region6: #{tpu_custom_call.1} parent=1 // loop_footer
      %s30 = sadd.s32 1, %s26
    $region7: #{tpu_custom_call.1} parent=1 // loop_footer_branch
      %25 = sbr.rel target = $region3
    $region8: #{tpu_custom_call.1} parent=1 // loop_exit
      _
    %652 = vsyncpa [#allocation6], 1
    %s653 = scalar_lea.sflag [#allocation6], 1
    %654 = vsyncpa %s653, 1

</llo_original>
